<compile_context>
chip_gen: v6e
topology: v6e:2x2x1
jax: 0.10.0
libtpu: 0.0.40
codegen_flags: <defaults>
</compile_context>

<pallas_src>
import math

import jax
import jax.numpy as jnp
from jax.experimental import pallas as pl
from jax.experimental.pallas import tpu as pltpu


_LANES = 512                      # lane-dense slab width (multiple of 128 -> unmasked vst)
_TILE_BYTES = 2 * 1024 * 1024     # per-stream tile cap: 4 streams x 2 buffers = 16 MiB VMEM
_MIN_TILE_BYTES = 256 * 1024      # per-stream tile floor (keeps per-step overhead amortized)
_TARGET_GRID_STEPS = 8            # aim for >= 8 grid steps -> pipelining + v7x dual-TC sharding
_VMEM_LIMIT_BYTES = 32 * 1024 * 1024  # safe on v5e/v6e (128 MiB phys) and v7x (64 MiB phys)


def _round_up(x: int, m: int) -> int:
    return ((x + m - 1) // m) * m


def _addsub_kernel(a_ref, b_ref, sum_ref, diff_ref):
    a = a_ref[...]
    b = b_ref[...]
    sum_ref[...] = a + b    # torch.sub(a, b, alpha=-1)
    diff_ref[...] = a - b   # torch.sub(a, b, alpha=1)


def _pick_tile_rows(rows: int, cols: int, itemsize: int, sublane: int) -> int:
    """Choose the row-tile: multiple of `sublane` (or the full dim), per-stream
    tile between _MIN_TILE_BYTES and _TILE_BYTES, shrunk so mid-size inputs get
    ~_TARGET_GRID_STEPS grid steps."""
    if rows <= sublane:
        return rows  # single block; full second-to-last dim is always legal
    row_bytes = cols * itemsize
    max_rows = max(sublane, (_TILE_BYTES // row_bytes) // sublane * sublane)
    min_rows = max(sublane, _round_up(-(-_MIN_TILE_BYTES // row_bytes), sublane))
    min_rows = min(min_rows, max_rows)
    target = _round_up(-(-rows // _TARGET_GRID_STEPS), sublane)
    tile_rows = max(min_rows, min(max_rows, target))
    if tile_rows >= rows:
        return rows  # one block covering the full dim
    return tile_rows


def _addsub_2d(a2: jax.Array, b2: jax.Array, rows: int, cols: int,
               dtype, itemsize: int, sublane: int):
    tile_rows = _pick_tile_rows(rows, cols, itemsize, sublane)
    grid = (pl.cdiv(rows, tile_rows),)  # ragged last row-block handled by Pallas
    spec = pl.BlockSpec((tile_rows, cols), lambda i: (i, 0))
    return pl.pallas_call(
        _addsub_kernel,
        out_shape=(
            jax.ShapeDtypeStruct((rows, cols), dtype),
            jax.ShapeDtypeStruct((rows, cols), dtype),
        ),
        grid=grid,
        in_specs=[spec, spec],
        out_specs=(spec, spec),
        compiler_params=pltpu.CompilerParams(
            # Independent tiles: lets Mosaic shard the grid across v7x's 2 TCs.
            dimension_semantics=("parallel",),
            vmem_limit_bytes=_VMEM_LIMIT_BYTES,
        ),
        cost_estimate=pl.CostEstimate(
            flops=2 * rows * cols,
            transcendentals=0,
            bytes_accessed=4 * rows * cols * itemsize,  # 2 reads + 2 writes / element
        ),
    )(a2, b2)


def addsub_pallas(input0: jax.Array, input1: jax.Array):
    """(input0 + input1, input0 - input1) via a tiled, pipelined Pallas kernel."""
    assert input0.shape == input1.shape and input0.dtype == input1.dtype
    shape = input0.shape
    dtype = input0.dtype
    itemsize = jnp.dtype(dtype).itemsize
    sublane = max(8, 32 // itemsize)  # 8 for 32-bit, 16 for bf16/fp16, 32 for int8/fp8
    n = math.prod(shape) if shape else 1

    if n == 0:
        return input0 + input1, input0 - input1

    # Copy-free path 1: natural (collapsed-leading-dims, last-dim) view with a
    # lane-aligned last dim.  reshape of a contiguous array is free -> zero
    # extra HBM passes on inputs or outputs.
    if shape and shape[-1] % 128 == 0 and shape[-1] * itemsize * sublane <= _TILE_BYTES:
        cols = shape[-1]
        rows = n // cols
        s, d = _addsub_2d(input0.reshape(rows, cols), input1.reshape(rows, cols),
                          rows, cols, dtype, itemsize, sublane)
        return s.reshape(shape), d.reshape(shape)

    # Copy-free path 2: flat size divides the 512-wide lane-dense slab.
    if n % _LANES == 0:
        rows = n // _LANES
        s, d = _addsub_2d(input0.reshape(rows, _LANES), input1.reshape(rows, _LANES),
                          rows, _LANES, dtype, itemsize, sublane)
        return s.reshape(shape), d.reshape(shape)

    # General path: pad only to the next multiple of _LANES (one partial row;
    # zero padding is inert for add/sub) and slice the outputs back.
    rows = -(-n // _LANES)
    padded = rows * _LANES
    a2 = jnp.pad(input0.reshape(-1), (0, padded - n)).reshape(rows, _LANES)
    b2 = jnp.pad(input1.reshape(-1), (0, padded - n)).reshape(rows, _LANES)
    s, d = _addsub_2d(a2, b2, rows, _LANES, dtype, itemsize, sublane)
    return (s.reshape(-1)[:n].reshape(shape),
            d.reshape(-1)[:n].reshape(shape))


def addsub(input0: jax.Array, input1: jax.Array, *, min_pallas_elements: int = 256 * 1024):
    """AddSubNet.forward. Below ~1 MiB of data the fused XLA add/sub is the
    faster 'kernel' (pallas_call launch overhead dominates); larger inputs use
    the Pallas kernel."""
    if math.prod(input0.shape) < min_pallas_elements:
        return input0 + input1, input0 - input1
    return addsub_pallas(input0, input1)


if __name__ == "__main__":
    key = jax.random.PRNGKey(0)
    k0, k1, k2, k3 = jax.random.split(key, 4)

    # Small shape consistent with the original simple-model (batch=2, 16 features).
    shape_small = (2, 16)
    a0 = jax.random.normal(k0, shape_small, dtype=jnp.float32)
    b0 = jax.random.normal(k1, shape_small, dtype=jnp.float32)
    # Force the Pallas path (exercises the pad + ragged path) even at this tiny size.
    s0, d0 = addsub(a0, b0, min_pallas_elements=0)
    jax.block_until_ready((s0, d0))
    assert jnp.allclose(s0, a0 + b0)
    assert jnp.allclose(d0, a0 - b0)

    # Modest lane-aligned shape: exercises the copy-free path with a multi-step
    # pipelined grid (>= 2 steps) without padding or output slicing.
    shape_aligned = (256, 512)
    a1 = jax.random.normal(k2, shape_aligned, dtype=jnp.float32)
    b1 = jax.random.normal(k3, shape_aligned, dtype=jnp.float32)
    s1, d1 = addsub_pallas(a1, b1)
    jax.block_until_ready((s1, d1))
    assert jnp.allclose(s1, a1 + b1)
    assert jnp.allclose(d1, a1 - b1)

    print("KERNEL_OK")
</pallas_src>

<mosaic_0001>
module attributes {stable_mosaic.version = 11 : i64} {
  func.func @_addsub_kernel(%arg0: i32, %arg1: memref<1x512xf32, #tpu.memory_space<vmem>>, %arg2: memref<1x512xf32, #tpu.memory_space<vmem>>, %arg3: memref<1x512xf32, #tpu.memory_space<vmem>>, %arg4: memref<1x512xf32, #tpu.memory_space<vmem>>) attributes {dimension_semantics = [#tpu.dimension_semantics<parallel>], iteration_bounds = array<i64: 1>, scalar_prefetch = 0 : i64, scratch_operands = 0 : i64, tpu.core_type = #tpu.core_type<tc>, window_params = [{transform_indices = @transform_0, window_bounds = array<i64: 1, 512>}, {transform_indices = @transform_1, window_bounds = array<i64: 1, 512>}, {transform_indices = @transform_2, window_bounds = array<i64: 1, 512>}, {transform_indices = @transform_3, window_bounds = array<i64: 1, 512>}]} {
    %c0 = arith.constant 0 : index
    %c0_0 = arith.constant 0 : index
    %0 = vector.load %arg1[%c0, %c0_0] : memref<1x512xf32, #tpu.memory_space<vmem>>, vector<1x512xf32>
    %c0_1 = arith.constant 0 : index
    %c0_2 = arith.constant 0 : index
    %1 = vector.load %arg2[%c0_1, %c0_2] : memref<1x512xf32, #tpu.memory_space<vmem>>, vector<1x512xf32>
    %2 = arith.addf %0, %1 : vector<1x512xf32>
    %c0_3 = arith.constant 0 : index
    %c0_4 = arith.constant 0 : index
    %3 = vector.load %arg3[%c0_3, %c0_4] : memref<1x512xf32, #tpu.memory_space<vmem>>, vector<1x512xf32>
    tpu.vector_store %arg3[%c0_3, %c0_4], %2 {strides = array<i32>} : memref<1x512xf32, #tpu.memory_space<vmem>>, vector<1x512xf32>,
    %4 = arith.subf %0, %1 : vector<1x512xf32>
    %c0_5 = arith.constant 0 : index
    %c0_6 = arith.constant 0 : index
    %5 = vector.load %arg4[%c0_5, %c0_6] : memref<1x512xf32, #tpu.memory_space<vmem>>, vector<1x512xf32>
    tpu.vector_store %arg4[%c0_5, %c0_6], %4 {strides = array<i32>} : memref<1x512xf32, #tpu.memory_space<vmem>>, vector<1x512xf32>,
    return
  }
  func.func @transform_0(%arg0: i32) -> (i32, i32) {
    %c0_i32 = arith.constant 0 : i32
    %c0_i32_0 = arith.constant 0 : i32
    return %arg0, %c0_i32 : i32, i32
  }
  func.func @transform_1(%arg0: i32) -> (i32, i32) {
    %c0_i32 = arith.constant 0 : i32
    %c0_i32_0 = arith.constant 0 : i32
    return %arg0, %c0_i32 : i32, i32
  }
  func.func @transform_2(%arg0: i32) -> (i32, i32) {
    %c0_i32 = arith.constant 0 : i32
    %c0_i32_0 = arith.constant 0 : i32
    return %arg0, %c0_i32 : i32, i32
  }
  func.func @transform_3(%arg0: i32) -> (i32, i32) {
    %c0_i32 = arith.constant 0 : i32
    %c0_i32_0 = arith.constant 0 : i32
    return %arg0, %c0_i32 : i32, i32
  }
}

</mosaic_0001>

<llo_original>
// kernel: tpu_custom_call.1
$region0: #{tpu_custom_call.1}
  #allocation0 [shape = 'u32[]', space=smem, size = 0x4, offset = 0x4, fixed_abs, tag = 'smem constant byte address 0x4 - core index']
  #allocation1 [shape = 'u32[144,128]{1,0:T(1,128)}', space=vmem, size = 0x12000, scoped, tag = 'internal scratch']
  %s0 = inlined_call_operand.hbm [shape: f32[1,512], index: 0, kind: input, shape index: {}]
  %s1 = inlined_call_operand.hbm [shape: f32[1,512], index: 1, kind: input, shape index: {}]
  %s2 = inlined_call_operand.hbm [shape: f32[1,512], index: 2, kind: output, shape index: {0}]
  %s3 = inlined_call_operand.hbm [shape: f32[1,512], index: 3, kind: output, shape index: {1}]
  %4 = xla_tuple %s2, %s3
  %s5 = sld [smem:[#allocation0]]
  $region34: #{tpu_custom_call.1} parent=0
    _
  %s7 = ssub.s32 1, %s5
  %s8 = scalar_select 0, %s7, %s5
  $region1: #{tpu_custom_call.1} parent=0
    #allocation2 [shape = 'u8[2048]{0}', space=vmem, size = 0x800, scoped, tag = 'input window, operand 0, single buffered']
    #allocation3 [shape = 's32[1]{0}', space=sflag, size = 0x4, scoped, tag = 'scoped memory for tpu_custom_call.1']
    #allocation4 [shape = 's32[1]{0}', space=sflag, size = 0x4, scoped, tag = 'scoped memory for tpu_custom_call.1']
    #allocation5 [shape = 'u8[2048]{0}', space=vmem, size = 0x800, scoped, tag = 'input window, operand 1, single buffered']
    #allocation6 [shape = 's32[1]{0}', space=sflag, size = 0x4, scoped, tag = 'scoped memory for tpu_custom_call.1']
    #allocation7 [shape = 'u8[2048]{0}', space=vmem, size = 0x800, scoped, tag = 'output window, operand 0, single buffered']
    #allocation8 [shape = 'u8[2048]{0}', space=vmem, size = 0x800, scoped, tag = 'output window, operand 1, single buffered']
    #allocation9 [shape = 's32[1]{0}', space=sflag, size = 0x4, scoped, tag = 'scoped memory for tpu_custom_call.1']
    %9 = vsyncpa [#allocation3], 0
    %10 = vsyncpa [#allocation6], 0
    %11 = vsyncpa [#allocation4], 0
    %12 = vsyncpa [#allocation9], 0
    // Predicated region
    $region2: #{tpu_custom_call.1} parent=1 // pred_check
      _
    $region3: #{tpu_custom_call.1} parent=1 // pred_check_branch
      %14 = sbr.rel (0) target = $region5
    $region4: #{tpu_custom_call.1} parent=1 // pred_region
      %s16 = ssub.s32 64, 64
      %17 = vsyncadd [#allocation3], %s16
      %s19 = sshll.u32 [#allocation2], 4
      %s20 = int_to_ptr.vmem [resolvable:$true] %s19
      %22 = dma.hbm_to_vmem [thread:$0]  %s0, 64, %s20, [#allocation3]
    $region5: #{tpu_custom_call.1} parent=1 // pred_fallthru
      _
    // Predicated region
    $region6: #{tpu_custom_call.1} parent=1 // pred_check
      _
    $region7: #{tpu_custom_call.1} parent=1 // pred_check_branch
      %24 = sbr.rel (0) target = $region9
    $region8: #{tpu_custom_call.1} parent=1 // pred_region
      %s26 = ssub.s32 64, 64
      %27 = vsyncadd [#allocation6], %s26
      %s29 = sshll.u32 [#allocation5], 4
      %s30 = int_to_ptr.vmem [resolvable:$true] %s29
      %32 = dma.hbm_to_vmem [thread:$0]  %s1, 64, %s30, [#allocation6]
    $region9: #{tpu_custom_call.1} parent=1 // pred_fallthru
      _
    // Predicated region
    $region10: #{tpu_custom_call.1} parent=1 // pred_check
      _
    $region11: #{tpu_custom_call.1} parent=1 // pred_check_branch
      %34 = sbr.rel (0) target = $region13
    $region12: #{tpu_custom_call.1} parent=1 // pred_region
      %35 = dma.done [#allocation3], 64
    $region13: #{tpu_custom_call.1} parent=1 // pred_fallthru
      _
    // Predicated region
    $region14: #{tpu_custom_call.1} parent=1 // pred_check
      _
    $region15: #{tpu_custom_call.1} parent=1 // pred_check_branch
      %37 = sbr.rel (0) target = $region17
    $region16: #{tpu_custom_call.1} parent=1 // pred_region
      %38 = dma.done [#allocation6], 64
    $region17: #{tpu_custom_call.1} parent=1 // pred_fallthru
      _
    %v39 = vld [vmem:[#allocation2] sm:$0xf]
    %v40 = vld [vmem:[#allocation5] sm:$0xf]
    %v41 = vadd.f32 %v39, %v40
    %v42 = vlaneseq
    %vm43 = vcmp.ge.s32.totalorder %v42, 0
    %vm44 = vcmp.lt.s32.totalorder %v42, 512
    %vm45 = vmand %vm43, %vm44
    %46 = vst.msk [vmem:[#allocation7] sm:$0xf] %vm45, %v41
    %v47 = vsub.f32 %v39, %v40
    %48 = vst.msk [vmem:[#allocation8] sm:$0xf] %vm45, %v47
    // Predicated region
    $region18: #{tpu_custom_call.1} parent=1 // pred_check
      _
    $region19: #{tpu_custom_call.1} parent=1 // pred_check_branch
      %50 = sbr.rel (0) target = $region21
    $region20: #{tpu_custom_call.1} parent=1 // pred_region
      %s52 = ssub.s32 64, 64
      %53 = vsyncadd [#allocation4], %s52
      %s55 = sshll.u32 [#allocation7], 4
      %s56 = int_to_ptr.vmem [resolvable:$true] %s55
      %58 = dma.vmem_to_hbm [thread:$0]  %s56, 64, %s2, [#allocation4]
    $region21: #{tpu_custom_call.1} parent=1 // pred_fallthru
      _
    // Predicated region
    $region22: #{tpu_custom_call.1} parent=1 // pred_check
      _
    $region23: #{tpu_custom_call.1} parent=1 // pred_check_branch
      %60 = sbr.rel (0) target = $region25
    $region24: #{tpu_custom_call.1} parent=1 // pred_region
      %s62 = ssub.s32 64, 64
      %63 = vsyncadd [#allocation9], %s62
      %s65 = sshll.u32 [#allocation8], 4
      %s66 = int_to_ptr.vmem [resolvable:$true] %s65
      %68 = dma.vmem_to_hbm [thread:$0]  %s66, 64, %s3, [#allocation9]
    $region25: #{tpu_custom_call.1} parent=1 // pred_fallthru
      _
    // Predicated region
    $region26: #{tpu_custom_call.1} parent=1 // pred_check
      _
    $region27: #{tpu_custom_call.1} parent=1 // pred_check_branch
      %70 = sbr.rel (0) target = $region29
    $region28: #{tpu_custom_call.1} parent=1 // pred_region
      %71 = dma.done [#allocation4], 64
    $region29: #{tpu_custom_call.1} parent=1 // pred_fallthru
      _
    // Predicated region
    $region30: #{tpu_custom_call.1} parent=1 // pred_check
      _
    $region31: #{tpu_custom_call.1} parent=1 // pred_check_branch
      %73 = sbr.rel (0) target = $region33
    $region32: #{tpu_custom_call.1} parent=1 // pred_region
      %74 = dma.done [#allocation9], 64
    $region33: #{tpu_custom_call.1} parent=1 // pred_fallthru
      _
    %75 = vsyncpa [#allocation3], 1
    %76 = vsyncpa [#allocation6], 1
    %77 = vsyncpa [#allocation4], 1
    %78 = vsyncpa [#allocation9], 1

</llo_original>
